<compile_context>
chip_gen: v5e
topology: v5e:2x2
jax: 0.10.0
libtpu: 0.0.40
codegen_flags: <defaults>
</compile_context>

<pallas_src>
import functools

import jax
import jax.numpy as jnp
from jax import lax
from jax.experimental import pallas as pl
from jax.experimental.pallas import tpu as pltpu


def _cdiv(a, b):
    return -(-a // b)


def _round_up(v, m):
    return _cdiv(v, m) * m


def _device_kind():
    try:
        return jax.devices()[0].device_kind.lower()
    except Exception:
        return ""


def _tpu_config():
    """Returns (num_cores, vmem_limit_bytes) from the local device kind."""
    kind = _device_kind()
    if "v7" in kind:
        # 2 TensorCores / chip, 64 MiB VMEM per TC -> leave headroom.
        return 2, 44 * 1024 * 1024
    if "lite" in kind or "v5e" in kind or "v6" in kind:
        # single TC, 128 MiB physical VMEM
        return 1, 64 * 1024 * 1024
    if "v4" in kind or "v5p" in kind:
        # megacore: 2 TCs sharded via "parallel" grid axis
        return 2, 64 * 1024 * 1024
    # unknown device: portable conservative defaults
    return 1, 32 * 1024 * 1024


def _ce_kernel(x_ref, t_ref, out_ref, *,
               n_rows, tile_rows, tiles_per_core, needs_mask):
    """Soft-target cross entropy over a row tile, accumulated into out block."""
    c = pl.program_id(0)   # core shard ("parallel")
    i = pl.program_id(1)   # row tile within shard ("arbitrary" reduction axis)

    @pl.when(i == 0)
    def _():
        out_ref[...] = jnp.zeros_like(out_ref)

    x = x_ref[...].astype(jnp.float32)      # [TR, L]
    tar = t_ref[...].astype(jnp.float32)    # [TR, L]

    # Numerically stable log-softmax pieces (row-local reductions only).
    m = jnp.max(x, axis=-1, keepdims=True)                              # [TR, 1]
    shifted = x - m                                                     # [TR, L]
    lse = jnp.log(jnp.sum(jnp.exp(shifted), axis=-1, keepdims=True))    # [TR, 1]

    # sum_l -tar * (shifted - lse)  ==  lse * sum_l(tar) - sum_l(tar * shifted)
    tar_sum = jnp.sum(tar, axis=-1, keepdims=True)                      # [TR, 1]
    tar_dot = jnp.sum(tar * shifted, axis=-1, keepdims=True)            # [TR, 1]
    row_ce = lse * tar_sum - tar_dot                                    # [TR, 1]

    row0 = (c * tiles_per_core + i) * tile_rows

    if needs_mask:
        is_full = row0 + tile_rows <= n_rows

        @pl.when(is_full)
        def _():
            out_ref[...] += jnp.sum(row_ce)

        @pl.when(jnp.logical_not(is_full))
        def _():
            # Tail / duplicated (clamped) tile: zero garbage rows BEFORE accumulation
            # (garbage may be NaN/Inf; it is row-local so jnp.where discards it).
            rows = lax.broadcasted_iota(jnp.int32, (tile_rows, 1), 0) + row0
            out_ref[...] += jnp.sum(jnp.where(rows < n_rows, row_ce, 0.0))
    else:
        out_ref[...] += jnp.sum(row_ce)


def tempo_loss(x, target, *, vmem_limit_bytes=None):
    """x, target: [b, t, n, l] -> scalar loss (matches TempoLoss.forward)."""
    b, t, n, l = x.shape
    assert target.shape == x.shape
    R = b * t * n

    num_cores, default_vmem = _tpu_config()
    if vmem_limit_bytes is None:
        vmem_limit_bytes = default_vmem

    xf = x.reshape(R, l)
    tf = target.reshape(R, l)

    # --- pick tile_rows from the scoped VMEM budget --------------------------
    lane_pad = _round_up(l, 128)  # VMEM lane padding of the last dim
    in_itemsize = max(jnp.dtype(x.dtype).itemsize, jnp.dtype(target.dtype).itemsize)
    # 2 inputs x 2 pipeline buffers (native dtype) + ~4 live f32 [TR, L] intermediates
    # (upcasts / shifted / exp / tar*shifted) kept alive by the row reductions.
    bytes_per_row = 2 * 2 * lane_pad * in_itemsize + 4 * lane_pad * 4
    budget = (vmem_limit_bytes * 3) // 4
    tile_rows = max(8, (budget // bytes_per_row) // 8 * 8)
    # No point making a tile larger than one core's share of rows.
    rows_per_core = _round_up(_cdiv(R, num_cores), 8)
    tile_rows = min(tile_rows, rows_per_core)

    n_row_blocks = _cdiv(R, tile_rows)
    tiles_per_core = _cdiv(n_row_blocks, num_cores)
    grid = (num_cores, tiles_per_core)

    # Only emit the row-mask path if a partial or duplicated tile can actually occur.
    needs_mask = (R % tile_rows != 0) or (n_row_blocks % num_cores != 0)

    def in_map(c, i):
        # Clamp so we never request a fully out-of-bounds block; any contribution
        # from a clamped / partial tile is zeroed in-kernel before accumulation.
        return (jnp.minimum(c * tiles_per_core + i, n_row_blocks - 1), 0)

    kernel = functools.partial(
        _ce_kernel, n_rows=R, tile_rows=tile_rows,
        tiles_per_core=tiles_per_core, needs_mask=needs_mask)

    partials = pl.pallas_call(
        kernel,
        out_shape=jax.ShapeDtypeStruct((num_cores, 1, 1), jnp.float32),
        grid_spec=pltpu.PrefetchScalarGridSpec(
            num_scalar_prefetch=0,
            grid=grid,
            in_specs=[
                pl.BlockSpec((tile_rows, l), in_map),
                pl.BlockSpec((tile_rows, l), in_map),
            ],
            out_specs=pl.BlockSpec((1, 1, 1), lambda c, i: (c, 0, 0)),
        ),
        compiler_params=pltpu.CompilerParams(
            dimension_semantics=("parallel", "arbitrary"),
            vmem_limit_bytes=vmem_limit_bytes,
        ),
    )(xf, tf)

    # sum_i mean_{b,n}(...) / t  ==  mean over all (b, t, n) rows
    return jnp.sum(partials) / jnp.float32(R)


def tempo_loss_ref(x, target):
    """Pure-JAX reference mirroring the PyTorch loop exactly."""
    t = x.shape[1]
    loss = 0.0
    for i in range(t):
        inp = x[:, i].astype(jnp.float32)
        tar = target[:, i].astype(jnp.float32)
        logp = jax.nn.log_softmax(inp, axis=-1)
        loss = loss + jnp.mean(jnp.sum(-tar * logp, axis=-1))
    return loss / t


if __name__ == "__main__":
    # Small deterministic shapes: batch=2, timesteps=8, n=4 rows per step, classes=32
    b, t, n, l = 2, 8, 4, 32
    key = jax.random.PRNGKey(0)
    kx, kt = jax.random.split(key)

    x = jax.random.normal(kx, (b, t, n, l), dtype=jnp.float32)
    # Soft targets: a proper probability distribution over the class axis.
    target = jax.nn.softmax(jax.random.normal(kt, (b, t, n, l), dtype=jnp.float32), axis=-1)

    loss = tempo_loss(x, target)
    loss = jax.block_until_ready(loss)

    ref = tempo_loss_ref(x, target)
    assert jnp.allclose(loss, ref, rtol=1e-5, atol=1e-5), (loss, ref)

    print("KERNEL_OK")
</pallas_src>

<mosaic_0001>
module attributes {stable_mosaic.version = 11 : i64} {
  func.func @_ce_kernel(%arg0: i32, %arg1: i32, %arg2: memref<64x32xf32, #tpu.memory_space<vmem>>, %arg3: memref<64x32xf32, #tpu.memory_space<vmem>>, %arg4: memref<1x1x1xf32, #tpu.memory_space<vmem>>) attributes {dimension_semantics = [#tpu.dimension_semantics<parallel>, #tpu.dimension_semantics<arbitrary>], iteration_bounds = array<i64: 1, 1>, scalar_prefetch = 0 : i64, scratch_operands = 0 : i64, tpu.core_type = #tpu.core_type<tc>, window_params = [{transform_indices = @transform_0, window_bounds = array<i64: 64, 32>}, {transform_indices = @transform_1, window_bounds = array<i64: 64, 32>}, {transform_indices = @transform_2, window_bounds = array<i64: 1, 1, 1>}]} {
    %c0_i32 = arith.constant 0 : i32
    %0 = arith.cmpi eq, %arg1, %c0_i32 : i32
    %1 = arith.extui %0 : i1 to i32
    %c0_i32_0 = arith.constant 0 : i32
    %2 = arith.cmpi ne, %1, %c0_i32_0 : i32
    scf.if %2 {
      %cst_14 = arith.constant 0.000000e+00 : f32
      %28 = vector.broadcast %cst_14 : f32 to vector<1x1x1xf32>
      %c0_15 = arith.constant 0 : index
      %c0_16 = arith.constant 0 : index
      %c0_17 = arith.constant 0 : index
      %29 = vector.load %arg4[%c0_15, %c0_16, %c0_17] : memref<1x1x1xf32, #tpu.memory_space<vmem>>, vector<1x1x1xf32>
      tpu.vector_store %arg4[%c0_15, %c0_16, %c0_17], %28 {strides = array<i32>} : memref<1x1x1xf32, #tpu.memory_space<vmem>>, vector<1x1x1xf32>,
    } else {
    }
    %c0 = arith.constant 0 : index
    %c0_1 = arith.constant 0 : index
    %3 = vector.load %arg2[%c0, %c0_1] : memref<64x32xf32, #tpu.memory_space<vmem>>, vector<64x32xf32>
    %c0_2 = arith.constant 0 : index
    %c0_3 = arith.constant 0 : index
    %4 = vector.load %arg3[%c0_2, %c0_3] : memref<64x32xf32, #tpu.memory_space<vmem>>, vector<64x32xf32>
    %cst = arith.constant dense<0xFF800000> : vector<64xf32>
    %5 = vector.multi_reduction <maximumf>, %3, %cst [1] : vector<64x32xf32> to vector<64xf32>
    %6 = vector.shape_cast %5 : vector<64xf32> to vector<64x1xf32>
    %7 = vector.broadcast %6 : vector<64x1xf32> to vector<64x32xf32>
    %8 = arith.subf %3, %7 : vector<64x32xf32>
    %9 = math.exp %8 : vector<64x32xf32>
    %cst_4 = arith.constant dense<0.000000e+00> : vector<64xf32>
    %10 = vector.multi_reduction <add>, %9, %cst_4 [1] : vector<64x32xf32> to vector<64xf32>
    %11 = vector.shape_cast %10 : vector<64xf32> to vector<64x1xf32>
    %12 = math.log %11 : vector<64x1xf32>
    %cst_5 = arith.constant dense<0.000000e+00> : vector<64xf32>
    %13 = vector.multi_reduction <add>, %4, %cst_5 [1] : vector<64x32xf32> to vector<64xf32>
    %14 = vector.shape_cast %13 : vector<64xf32> to vector<64x1xf32>
    %15 = arith.mulf %4, %8 : vector<64x32xf32>
    %cst_6 = arith.constant dense<0.000000e+00> : vector<64xf32>
    %16 = vector.multi_reduction <add>, %15, %cst_6 [1] : vector<64x32xf32> to vector<64xf32>
    %17 = vector.shape_cast %16 : vector<64xf32> to vector<64x1xf32>
    %18 = arith.mulf %12, %14 : vector<64x1xf32>
    %19 = arith.subf %18, %17 : vector<64x1xf32>
    %c0_7 = arith.constant 0 : index
    %c0_8 = arith.constant 0 : index
    %c0_9 = arith.constant 0 : index
    %20 = vector.load %arg4[%c0_7, %c0_8, %c0_9] : memref<1x1x1xf32, #tpu.memory_space<vmem>>, vector<1x1x1xf32>
    %21 = vector.shape_cast %19 : vector<64x1xf32> to vector<1x64x1xf32>
    %cst_10 = arith.constant dense<0.000000e+00> : vector<1xf32>
    %22 = vector.multi_reduction <add>, %21, %cst_10 [1, 2] : vector<1x64x1xf32> to vector<1xf32>
    %23 = vector.shape_cast %22 : vector<1xf32> to vector<1x1x1xf32>
    %24 = vector.extract %23[0, 0, 0] : f32 from vector<1x1x1xf32>
    %25 = vector.broadcast %24 : f32 to vector<1x1x1xf32>
    %26 = arith.addf %20, %25 : vector<1x1x1xf32>
    %c0_11 = arith.constant 0 : index
    %c0_12 = arith.constant 0 : index
    %c0_13 = arith.constant 0 : index
    %27 = vector.load %arg4[%c0_11, %c0_12, %c0_13] : memref<1x1x1xf32, #tpu.memory_space<vmem>>, vector<1x1x1xf32>
    tpu.vector_store %arg4[%c0_11, %c0_12, %c0_13], %26 {strides = array<i32>} : memref<1x1x1xf32, #tpu.memory_space<vmem>>, vector<1x1x1xf32>,
    return
  }
  func.func @transform_0(%arg0: i32, %arg1: i32) -> (i32, i32) {
    %c1_i32 = arith.constant 1 : i32
    %0 = arith.muli %arg0, %c1_i32 : i32
    %1 = arith.addi %0, %arg1 : i32
    %c0_i32 = arith.constant 0 : i32
    %2 = arith.minsi %1, %c0_i32 : i32
    %c0_i32_0 = arith.constant 0 : i32
    %c0_i32_1 = arith.constant 0 : i32
    return %2, %c0_i32_0 : i32, i32
  }
  func.func @transform_1(%arg0: i32, %arg1: i32) -> (i32, i32) {
    %c1_i32 = arith.constant 1 : i32
    %0 = arith.muli %arg0, %c1_i32 : i32
    %1 = arith.addi %0, %arg1 : i32
    %c0_i32 = arith.constant 0 : i32
    %2 = arith.minsi %1, %c0_i32 : i32
    %c0_i32_0 = arith.constant 0 : i32
    %c0_i32_1 = arith.constant 0 : i32
    return %2, %c0_i32_0 : i32, i32
  }
  func.func @transform_2(%arg0: i32, %arg1: i32) -> (i32, i32, i32) {
    %c0_i32 = arith.constant 0 : i32
    %c0_i32_0 = arith.constant 0 : i32
    %c0_i32_1 = arith.constant 0 : i32
    return %arg0, %c0_i32, %c0_i32_0 : i32, i32, i32
  }
}

</mosaic_0001>

<llo_original>
// kernel: tpu_custom_call.1
$region0: #{tpu_custom_call.1}
  #allocation0 [shape = 'u32[]', space=smem, size = 0x4, offset = 0x4, fixed_abs, tag = 'smem constant byte address 0x4 - core index']
  #allocation1 [shape = 'u32[72,128]{1,0:T(1,128)}', space=vmem, size = 0x9000, scoped, tag = 'internal scratch']
  %s0 = inlined_call_operand.vmem [shape: f32[64,32], index: 0, kind: input, shape index: {}]
  %s1 = inlined_call_operand.vmem [shape: f32[64,32], index: 1, kind: input, shape index: {}]
  %s2 = inlined_call_operand.hbm [shape: f32[1,1,1], index: 2, kind: output, shape index: {}]
  %s3 = sld [smem:[#allocation0]]
  $region22: #{tpu_custom_call.1} parent=0
    _
  %s5 = ssub.s32 1, %s3
  %s6 = scalar_select 0, %s5, %s3
  $region1: #{tpu_custom_call.1} parent=0
    #allocation2 [shape = 'u8[512]{0}', space=vmem, size = 0x400, scoped, tag = 'output window, operand 0, single buffered']
    #allocation3 [shape = 's32[1]{0}', space=sflag, size = 0x4, scoped, tag = 'scoped memory for tpu_custom_call.1']
    %7 = vsyncpa [#allocation3], 0
    // Predicated region
    $region2: #{tpu_custom_call.1} parent=1 // pred_check
      _
    $region3: #{tpu_custom_call.1} parent=1 // pred_check_branch
      %9 = sbr.rel (0) target = $region5
    $region4: #{tpu_custom_call.1} parent=1 // pred_region
      %s10 = sadd.s32 0, 0
      %p11 = scmp.lt.s32.totalorder %s10, 0
      %s12 = scalar_select %p11, %s10, 0
      %s13 = smul.u32 8, %s12
      %p14 = scmp.lt.s32.totalorder %s13, 7
      %s15 = scalar_select %p14, %s13, 7
      %s16 = smul.addr %s15, 8
      %s17 = scalar_lea.vmem %s0, %s16
      %s18 = sadd.s32 0, 0
      %p19 = scmp.lt.s32.totalorder %s18, 0
      %s20 = scalar_select %p19, %s18, 0
      %s21 = smul.u32 8, %s20
    $region5: #{tpu_custom_call.1} parent=1 // pred_fallthru
      _
    // Predicated region
    $region6: #{tpu_custom_call.1} parent=1 // pred_check
      _
    $region7: #{tpu_custom_call.1} parent=1 // pred_check_branch
      %23 = sbr.rel (0) target = $region9
    $region8: #{tpu_custom_call.1} parent=1 // pred_region
      %s24 = sadd.s32 0, 0
      %p25 = scmp.lt.s32.totalorder %s24, 0
      %s26 = scalar_select %p25, %s24, 0
      %s27 = smul.u32 8, %s26
      %p28 = scmp.lt.s32.totalorder %s27, 7
      %s29 = scalar_select %p28, %s27, 7
      %s30 = smul.addr %s29, 8
      %s31 = scalar_lea.vmem %s1, %s30
      %s32 = sadd.s32 0, 0
      %p33 = scmp.lt.s32.totalorder %s32, 0
      %s34 = scalar_select %p33, %s32, 0
      %s35 = smul.u32 8, %s34
    $region9: #{tpu_custom_call.1} parent=1 // pred_fallthru
      _
    %s36 = sadd.s32 0, 0
    %p37 = scmp.lt.s32.totalorder %s36, 0
    %s38 = scalar_select %p37, %s36, 0
    %s39 = smul.u32 8, %s38
    %p40 = scmp.lt.s32.totalorder %s39, 7
    %s41 = scalar_select %p40, %s39, 7
    %s42 = smul.addr %s41, 8
    %s43 = scalar_lea.vmem %s0, %s42
    %s44 = sadd.s32 0, 0
    %p45 = scmp.lt.s32.totalorder %s44, 0
    %s46 = scalar_select %p45, %s44, 0
    %s47 = smul.u32 8, %s46
    %p48 = scmp.lt.s32.totalorder %s47, 7
    %s49 = scalar_select %p48, %s47, 7
    %s50 = smul.addr %s49, 8
    %s51 = scalar_lea.vmem %s1, %s50
    %s52 = sadd.s32 0, 0
    %p53 = scmp.lt.s32.totalorder %s52, 0
    %s54 = scalar_select %p53, %s52, 0
    %s55 = smul.u32 8, %s54
    %p56 = scmp.lt.s32.totalorder %s55, 7
    %s57 = scalar_select %p56, %s55, 7
    %s58 = smul.addr %s57, 8
    %s59 = scalar_lea.vmem %s0, %s58
    %s60 = sadd.s32 0, 0
    %p61 = scmp.lt.s32.totalorder %s60, 0
    %s62 = scalar_select %p61, %s60, 0
    %s63 = smul.u32 8, %s62
    %s64 = sadd.s32 0, 0
    %p65 = scmp.lt.s32.totalorder %s64, 0
    %s66 = scalar_select %p65, %s64, 0
    %s67 = smul.u32 8, %s66
    %p68 = scmp.lt.s32.totalorder %s67, 7
    %s69 = scalar_select %p68, %s67, 7
    %s70 = smul.addr %s69, 8
    %s71 = scalar_lea.vmem %s1, %s70
    %s72 = sadd.s32 0, 0
    %p73 = scmp.lt.s32.totalorder %s72, 0
    %s74 = scalar_select %p73, %s72, 0
    %s75 = smul.u32 8, %s74
    %p76 = scmp.eq.s32.totalorder 0, 0
    // Predicated region
    $region10: #{tpu_custom_call.1} parent=1 // pred_check
      %p77 = pneg %p76
    $region11: #{tpu_custom_call.1} parent=1 // pred_check_branch
      %79 = sbr.rel (%p77) target = $region13
    $region12: #{tpu_custom_call.1} parent=1 // pred_region
      %vm80 = vcmask 0
      %81 = vst.msk [vmem:[#allocation2] sm:$0x1] %vm80, 0.0
    $region13: #{tpu_custom_call.1} parent=1 // pred_fallthru
      _
    %v82 = vld [vmem:[%s59] sm:$0xff]
    %v83 = vld [vmem:[%s59 + $0x8] sm:$0xff]
    %v84 = vld [vmem:[%s59 + $0x10] sm:$0xff]
    %v85 = vld [vmem:[%s59 + $0x18] sm:$0xff]
    %v86 = vld [vmem:[%s59 + $0x20] sm:$0xff]
    %v87 = vld [vmem:[%s59 + $0x28] sm:$0xff]
    %v88 = vld [vmem:[%s59 + $0x30] sm:$0xff]
    %v89 = vld [vmem:[%s59 + $0x38] sm:$0xff]
    %v90 = vld [vmem:[%s71] sm:$0xff]
    %v91 = vld [vmem:[%s71 + $0x8] sm:$0xff]
    %v92 = vld [vmem:[%s71 + $0x10] sm:$0xff]
    %v93 = vld [vmem:[%s71 + $0x18] sm:$0xff]
    %v94 = vld [vmem:[%s71 + $0x20] sm:$0xff]
    %v95 = vld [vmem:[%s71 + $0x28] sm:$0xff]
    %v96 = vld [vmem:[%s71 + $0x30] sm:$0xff]
    %v97 = vld [vmem:[%s71 + $0x38] sm:$0xff]
    %vm98 = vcmask 261120
    %v99 = vsel %vm98, %v82, -inf
    %100 = vmax.xlane.f32.xlu0 %v99
    %v101 = vpop.xlane.xlu0 %100
    %v102 = vsel %vm98, %v83, -inf
    %103 = vmax.xlane.f32.xlu0 %v102
    %v104 = vpop.xlane.xlu0 %103
    %v105 = vsel %vm98, %v84, -inf
    %106 = vmax.xlane.f32.xlu0 %v105
    %v107 = vpop.xlane.xlu0 %106
    %v108 = vsel %vm98, %v85, -inf
    %109 = vmax.xlane.f32.xlu0 %v108
    %v110 = vpop.xlane.xlu0 %109
    %v111 = vsel %vm98, %v86, -inf
    %112 = vmax.xlane.f32.xlu0 %v111
    %v113 = vpop.xlane.xlu0 %112
    %v114 = vsel %vm98, %v87, -inf
    %115 = vmax.xlane.f32.xlu0 %v114
    %v116 = vpop.xlane.xlu0 %115
    %v117 = vsel %vm98, %v88, -inf
    %118 = vmax.xlane.f32.xlu0 %v117
    %v119 = vpop.xlane.xlu0 %118
    %v120 = vsel %vm98, %v89, -inf
    %121 = vmax.xlane.f32.xlu0 %v120
    %v122 = vpop.xlane.xlu0 %121
    %v123 = vsub.f32 %v82, %v101
    %v124 = vsub.f32 %v83, %v104
    %v125 = vsub.f32 %v84, %v107
    %v126 = vsub.f32 %v85, %v110
    %v127 = vsub.f32 %v86, %v113
    %v128 = vsub.f32 %v87, %v116
    %v129 = vsub.f32 %v88, %v119
    %v130 = vsub.f32 %v89, %v122
    %v131 = vmul.f32 %v123, 1.442695
    %v132 = vpow.pop %v131
    %v133 = vmul.f32 %v124, 1.442695
    %v134 = vpow.pop %v133
    %v135 = vmul.f32 %v125, 1.442695
    %v136 = vpow.pop %v135
    %v137 = vmul.f32 %v126, 1.442695
    %v138 = vpow.pop %v137
    %v139 = vmul.f32 %v127, 1.442695
    %v140 = vpow.pop %v139
    %v141 = vmul.f32 %v128, 1.442695
    %v142 = vpow.pop %v141
    %v143 = vmul.f32 %v129, 1.442695
    %v144 = vpow.pop %v143
    %v145 = vmul.f32 %v130, 1.442695
    %v146 = vpow.pop %v145
    %v147 = vsel %vm98, %v132, 0.0
    %148 = vadd.xlane.f32.xlu0 %v147
    %v149 = vpop.xlane.xlu0 %148
    %v150 = vsel %vm98, %v134, 0.0
    %151 = vadd.xlane.f32.xlu0 %v150
    %v152 = vpop.xlane.xlu0 %151
    %v153 = vsel %vm98, %v136, 0.0
    %154 = vadd.xlane.f32.xlu0 %v153
    %v155 = vpop.xlane.xlu0 %154
    %v156 = vsel %vm98, %v138, 0.0
    %157 = vadd.xlane.f32.xlu0 %v156
    %v158 = vpop.xlane.xlu0 %157
    %v159 = vsel %vm98, %v140, 0.0
    %160 = vadd.xlane.f32.xlu0 %v159
    %v161 = vpop.xlane.xlu0 %160
    %v162 = vsel %vm98, %v142, 0.0
    %163 = vadd.xlane.f32.xlu0 %v162
    %v164 = vpop.xlane.xlu0 %163
    %v165 = vsel %vm98, %v144, 0.0
    %166 = vadd.xlane.f32.xlu0 %v165
    %v167 = vpop.xlane.xlu0 %166
    %v168 = vsel %vm98, %v146, 0.0
    %169 = vadd.xlane.f32.xlu0 %v168
    %v170 = vpop.xlane.xlu0 %169
    %v171 = vlog2.pop %v149
    %v172 = vmul.f32 %v171, 0.6931472
    %v173 = vlog2.pop %v152
    %v174 = vmul.f32 %v173, 0.6931472
    %v175 = vlog2.pop %v155
    %v176 = vmul.f32 %v175, 0.6931472
    %v177 = vlog2.pop %v158
    %v178 = vmul.f32 %v177, 0.6931472
    %v179 = vlog2.pop %v161
    %v180 = vmul.f32 %v179, 0.6931472
    %v181 = vlog2.pop %v164
    %v182 = vmul.f32 %v181, 0.6931472
    %v183 = vlog2.pop %v167
    %v184 = vmul.f32 %v183, 0.6931472
    %v185 = vlog2.pop %v170
    %v186 = vmul.f32 %v185, 0.6931472
    %v187 = vsel %vm98, %v90, 0.0
    %188 = vadd.xlane.f32.xlu0 %v187
    %v189 = vpop.xlane.xlu0 %188
    %v190 = vsel %vm98, %v91, 0.0
    %191 = vadd.xlane.f32.xlu0 %v190
    %v192 = vpop.xlane.xlu0 %191
    %v193 = vsel %vm98, %v92, 0.0
    %194 = vadd.xlane.f32.xlu0 %v193
    %v195 = vpop.xlane.xlu0 %194
    %v196 = vsel %vm98, %v93, 0.0
    %197 = vadd.xlane.f32.xlu0 %v196
    %v198 = vpop.xlane.xlu0 %197
    %v199 = vsel %vm98, %v94, 0.0
    %200 = vadd.xlane.f32.xlu0 %v199
    %v201 = vpop.xlane.xlu0 %200
    %v202 = vsel %vm98, %v95, 0.0
    %203 = vadd.xlane.f32.xlu0 %v202
    %v204 = vpop.xlane.xlu0 %203
    %v205 = vsel %vm98, %v96, 0.0
    %206 = vadd.xlane.f32.xlu0 %v205
    %v207 = vpop.xlane.xlu0 %206
    %v208 = vsel %vm98, %v97, 0.0
    %209 = vadd.xlane.f32.xlu0 %v208
    %v210 = vpop.xlane.xlu0 %209
    %v211 = vmul.f32 %v90, %v123
    %v212 = vmul.f32 %v91, %v124
    %v213 = vmul.f32 %v92, %v125
    %v214 = vmul.f32 %v93, %v126
    %v215 = vmul.f32 %v94, %v127
    %v216 = vmul.f32 %v95, %v128
    %v217 = vmul.f32 %v96, %v129
    %v218 = vmul.f32 %v97, %v130
    %v219 = vsel %vm98, %v211, 0.0
    %220 = vadd.xlane.f32.xlu0 %v219
    %v221 = vpop.xlane.xlu0 %220
    %v222 = vsel %vm98, %v212, 0.0
    %223 = vadd.xlane.f32.xlu0 %v222
    %v224 = vpop.xlane.xlu0 %223
    %v225 = vsel %vm98, %v213, 0.0
    %226 = vadd.xlane.f32.xlu0 %v225
    %v227 = vpop.xlane.xlu0 %226
    %v228 = vsel %vm98, %v214, 0.0
    %229 = vadd.xlane.f32.xlu0 %v228
    %v230 = vpop.xlane.xlu0 %229
    %v231 = vsel %vm98, %v215, 0.0
    %232 = vadd.xlane.f32.xlu0 %v231
    %v233 = vpop.xlane.xlu0 %232
    %v234 = vsel %vm98, %v216, 0.0
    %235 = vadd.xlane.f32.xlu0 %v234
    %v236 = vpop.xlane.xlu0 %235
    %v237 = vsel %vm98, %v217, 0.0
    %238 = vadd.xlane.f32.xlu0 %v237
    %v239 = vpop.xlane.xlu0 %238
    %v240 = vsel %vm98, %v218, 0.0
    %241 = vadd.xlane.f32.xlu0 %v240
    %v242 = vpop.xlane.xlu0 %241
    %v243 = vmul.f32 %v172, %v189
    %v244 = vmul.f32 %v174, %v192
    %v245 = vmul.f32 %v176, %v195
    %v246 = vmul.f32 %v178, %v198
    %v247 = vmul.f32 %v180, %v201
    %v248 = vmul.f32 %v182, %v204
    %v249 = vmul.f32 %v184, %v207
    %v250 = vmul.f32 %v186, %v210
    %v251 = vsub.f32 %v243, %v221
    %v252 = vsub.f32 %v244, %v224
    %v253 = vsub.f32 %v245, %v227
    %v254 = vsub.f32 %v246, %v230
    %v255 = vsub.f32 %v247, %v233
    %v256 = vsub.f32 %v248, %v236
    %v257 = vsub.f32 %v249, %v239
    %v258 = vsub.f32 %v250, %v242
    %v259 = vld [vmem:[#allocation2] sm:$0x1]
    %vm260 = vcmask 7168
    %v261 = vsel %vm260, %v251, 0.0
    %v262 = vsel %vm260, %v252, 0.0
    %v263 = vadd.f32 %v261, %v262
    %v264 = vsel %vm260, %v253, 0.0
    %v265 = vadd.f32 %v263, %v264
    %v266 = vsel %vm260, %v254, 0.0
    %v267 = vadd.f32 %v265, %v266
    %v268 = vsel %vm260, %v255, 0.0
    %v269 = vadd.f32 %v267, %v268
    %v270 = vsel %vm260, %v256, 0.0
    %v271 = vadd.f32 %v269, %v270
    %v272 = vsel %vm260, %v257, 0.0
    %v273 = vadd.f32 %v271, %v272
    %v274 = vsel %vm260, %v258, 0.0
    %v275 = vadd.f32 %v273, %v274
    %276 = vadd.xlane.f32.xlu0 %v275
    %v277 = vpop.xlane.xlu0 %276
    %v278 = vrot.slane %v277, 4
    %v279 = vadd.f32 %v277, %v278
    %v280 = vrot.slane %v279, 2
    %v281 = vadd.f32 %v279, %v280
    %v282 = vrot.slane %v281, 1
    %v283 = vadd.f32 %v281, %v282
    %s284 = vtos %v283
    %v285 = vstv %s284
    %v286 = vadd.f32 %v259, %v285
    %vm287 = vcmask 0
    %288 = vst.msk [vmem:[#allocation2] sm:$0x1] %vm287, %v286
    // Predicated region
    $region14: #{tpu_custom_call.1} parent=1 // pred_check
      _
    $region15: #{tpu_custom_call.1} parent=1 // pred_check_branch
      %290 = sbr.rel (0) target = $region17
    $region16: #{tpu_custom_call.1} parent=1 // pred_region
      %292 = vsyncadd [#allocation3], 0
      %s294 = sshll.u32 [#allocation2], 4
      %s295 = int_to_ptr.vmem [resolvable:$true] %s294
      %s296 = sshll.u32 %s2, 4
      %s297 = int_to_ptr.hbm [resolvable:$true] %s296
      %299 = dma.vmem_to_hbm [thread:$0]  %s295, 16, %s297, [#allocation3]
    $region17: #{tpu_custom_call.1} parent=1 // pred_fallthru
      _
    // Predicated region
    $region18: #{tpu_custom_call.1} parent=1 // pred_check
      _
    $region19: #{tpu_custom_call.1} parent=1 // pred_check_branch
      %301 = sbr.rel (0) target = $region21
    $region20: #{tpu_custom_call.1} parent=1 // pred_region
      %303 = dma.done [#allocation3], 16
    $region21: #{tpu_custom_call.1} parent=1 // pred_fallthru
      _
    %304 = vsyncpa [#allocation3], 1

</llo_original>
